<compile_context>
chip_gen: v6e
topology: v6e:2x2x1
jax: 0.10.0
libtpu: 0.0.40
codegen_flags: <defaults>
</compile_context>

<pallas_src>
import jax
import jax.numpy as jnp
from jax.experimental import pallas as pl
from jax.experimental.pallas import tpu as pltpu


def _n2t_kernel(bound_ref, x_ref, w1_ref, b1_ref, w2_ref, b2_ref, o_ref):
    # bound_ref: SMEM (1,) f32
    # x_ref  : (B, dim_in)            f32
    # w1_ref : (dim_in, KMg)          bf16  (folded, group-local)
    # b1_ref : (1, KMg)               f32
    # w2_ref : (KMg, Kg)              f32   (block-diagonal, group-local)
    # b2_ref : (1, Kg)                f32
    # o_ref  : (B, Kg)                f32   (lane-dense store)
    bound = bound_ref[0]

    # Layer 1: one lane-dense bf16 MXU matmul for all (group-local) output dims, f32 acc.
    x16 = x_ref[...].astype(jnp.bfloat16)
    h = jnp.dot(x16, w1_ref[...], preferred_element_type=jnp.float32)
    h = jnp.maximum(h + b1_ref[...], 0.0)                       # afunc = relu (f32)

    # Layer 2: single block-diagonal matmul == per-k (B,M)@(M,1) reductions fused.
    y = jnp.dot(h, w2_ref[...], preferred_element_type=jnp.float32) + b2_ref[...]
    o_ref[...] = (bound * jnp.tanh(y)).astype(o_ref.dtype)      # bound * tanh


def fold_params(w1, b1, w2, b2, *, num_groups=1, weight_dtype=jnp.bfloat16):
    """One-time fold of PyTorch-layout params. Call ONCE at parameter-init time and
    reuse the result across forward calls (this is the expensive HBM relayout).

    w1: (K, D, M), b1: (K, 1, M), w2: (K, M, 1), b2: (K, 1, 1).
    Returns a tuple (w1f, b1f, w2f, b2f):
      num_groups == 1: 2-D arrays  (D, K*M), (1, K*M), (K*M, K), (1, K)
      num_groups == g: group-leading 3-D arrays with group-local folds.
    """
    K, D, M = w1.shape
    g = int(num_groups)
    assert K % g == 0, "dim_out must be divisible by num_groups"
    Kg = K // g

    # column kk*M + m of group i is W1[i*Kg + kk][:, m]
    w1f = (jnp.transpose(w1.reshape(g, Kg, D, M), (0, 2, 1, 3))
           .reshape(g, D, Kg * M).astype(weight_dtype))
    b1f = b1.reshape(g, 1, Kg * M).astype(jnp.float32)
    # block-diagonal second layer: w2f[i][kk*M + m, j] = W2[i*Kg+kk, m, 0] if j == kk else 0
    eye = jnp.eye(Kg, dtype=jnp.float32)
    w2r = w2.reshape(g, Kg, M).astype(jnp.float32)
    w2f = (w2r[:, :, :, None] * eye[None, :, None, :]).reshape(g, Kg * M, Kg)
    b2f = b2.reshape(g, 1, Kg).astype(jnp.float32)

    if g == 1:
        return (w1f[0], b1f[0], w2f[0], b2f[0])
    return (w1f, b1f, w2f, b2f)


def _cost(B, D, KM, K, w1_itemsize):
    return pl.CostEstimate(
        flops=2 * B * D * KM + 2 * B * KM * K,
        transcendentals=B * K,
        bytes_accessed=(w1_itemsize * D * KM
                        + 4 * (B * D + KM + KM * K + K + B * K)),
    )


def n2t_forward(x, folded, bound):
    """x: (B, *shape_in) f32; folded: output of fold_params; bound: scalar.
    Returns (B, dim_out) f32, matching PyTorch N2t.forward()."""
    w1f, b1f, w2f, b2f = folded
    B = x.shape[0]
    xf = x.reshape(B, -1).astype(jnp.float32)            # matches torch .view(B, -1)
    bound_arr = jnp.asarray(bound, jnp.float32).reshape(1)

    if w1f.ndim == 2:
        # ---- single-core path (v5e / v6e, or v7x fallback): grid-less, no pipeline ----
        D, KM = w1f.shape
        K = w2f.shape[1]
        assert xf.shape[1] == D
        return pl.pallas_call(
            _n2t_kernel,
            out_shape=jax.ShapeDtypeStruct((B, K), jnp.float32),
            in_specs=[
                pl.BlockSpec(memory_space=pltpu.MemorySpace.SMEM),   # bound (scalar)
                pl.BlockSpec(memory_space=pltpu.MemorySpace.VMEM),   # x
                pl.BlockSpec(memory_space=pltpu.MemorySpace.VMEM),   # W1 folded (bf16)
                pl.BlockSpec(memory_space=pltpu.MemorySpace.VMEM),   # b1 folded
                pl.BlockSpec(memory_space=pltpu.MemorySpace.VMEM),   # W2 block-diagonal
                pl.BlockSpec(memory_space=pltpu.MemorySpace.VMEM),   # b2 folded
            ],
            out_specs=pl.BlockSpec(memory_space=pltpu.MemorySpace.VMEM),
            cost_estimate=_cost(B, D, KM, K, w1f.dtype.itemsize),
        )(bound_arr, xf, w1f, b1f, w2f, b2f)

    # ---- multi-core path (v7x): split output-dim groups across TensorCores ----
    g, D, KMg = w1f.shape
    Kg = w2f.shape[2]
    K = g * Kg
    assert xf.shape[1] == D
    out = pl.pallas_call(
        _n2t_kernel,
        out_shape=jax.ShapeDtypeStruct((g, B, Kg), jnp.float32),
        grid=(g,),
        in_specs=[
            pl.BlockSpec(memory_space=pltpu.MemorySpace.SMEM),       # bound (scalar)
            pl.BlockSpec((B, D), lambda i: (0, 0)),                  # x (shared)
            pl.BlockSpec((None, D, KMg), lambda i: (i, 0, 0)),       # W1 group slab
            pl.BlockSpec((None, 1, KMg), lambda i: (i, 0, 0)),       # b1 group slab
            pl.BlockSpec((None, KMg, Kg), lambda i: (i, 0, 0)),      # W2 group block-diag
            pl.BlockSpec((None, 1, Kg), lambda i: (i, 0, 0)),        # b2 group slab
        ],
        out_specs=pl.BlockSpec((None, B, Kg), lambda i: (i, 0, 0)),
        compiler_params=pltpu.CompilerParams(
            dimension_semantics=("parallel",)),                      # shard across TCs
        cost_estimate=_cost(B, D, g * KMg, K, w1f.dtype.itemsize),
    )(bound_arr, xf, w1f, b1f, w2f, b2f)
    # (g, B, Kg) -> (B, K); a ~B*K*4-byte relayout, negligible next to the sharded W1 DMA.
    return jnp.transpose(out, (1, 0, 2)).reshape(B, K)


def pick_num_groups(dim_out):
    """2-way output-dim split only where there are 2 TensorCores/chip (v7x)."""
    try:
        kind = jax.devices()[0].device_kind.lower()
    except Exception:
        return 1
    if ("v7" in kind or "7x" in kind) and dim_out % 2 == 0:
        return 2
    return 1


def _reference(x, w1, b1, w2, b2, bound, *, bf16_inputs=False):
    """Pure-JAX reference matching the PyTorch forward (original weight layout).
    With bf16_inputs=True, x and W1 are rounded to bf16 exactly as the kernel does."""
    B = x.shape[0]
    xf = x.reshape(B, -1)
    if bf16_inputs:
        xf = xf.astype(jnp.bfloat16).astype(jnp.float32)
        w1 = w1.astype(jnp.bfloat16).astype(jnp.float32)
    h = jnp.maximum(
        jnp.einsum("bd,kdm->kbm", xf, w1, precision=jax.lax.Precision.HIGHEST) + b1, 0.0)
    y = bound * jnp.tanh(
        jnp.einsum("kbm,kmo->kbo", h, w2, precision=jax.lax.Precision.HIGHEST) + b2)
    return jnp.transpose(y[:, :, 0], (1, 0))                       # (B, dim_out)


if __name__ == "__main__":
    # Module hyperparameters (small, consistent with the module).
    shape_in = (4, 16, 16)          # -> dim_in = 1024
    batch = 2
    dim_out = 8
    module_size = 32
    bound = 1.5

    dim_in = 1
    for s in shape_in:
        dim_in *= s

    # Deterministic parameter init: uniform(-std, std), std = 1/sqrt(dim_in).
    std = 1.0 / (dim_in ** 0.5)
    key = jax.random.PRNGKey(0)
    kx, k1, kb1, k2, kb2 = jax.random.split(key, 5)
    x = jax.random.normal(kx, (batch,) + shape_in, dtype=jnp.float32)
    w1 = jax.random.uniform(k1, (dim_out, dim_in, module_size), jnp.float32, -std, std)
    b1 = jax.random.uniform(kb1, (dim_out, 1, module_size), jnp.float32, -std, std)
    w2 = jax.random.uniform(k2, (dim_out, module_size, 1), jnp.float32, -std, std)
    b2 = jax.random.uniform(kb2, (dim_out, 1, 1), jnp.float32, -std, std)

    # One-time fold (hoisted out of the per-call path; bf16 W1).
    num_groups = pick_num_groups(dim_out)
    folded = tuple(jax.block_until_ready(a)
                   for a in fold_params(w1, b1, w2, b2, num_groups=num_groups))

    fwd = jax.jit(n2t_forward)
    out = jax.block_until_ready(fwd(x, folded, bound))
    out = jax.block_until_ready(fwd(x, folded, bound))   # reused fold, no re-trace

    assert out.shape == (batch, dim_out), out.shape
    # Tight check against a reference using the same bf16-rounded inputs as the kernel.
    ref_matched = _reference(x, w1, b1, w2, b2, bound, bf16_inputs=True)
    assert jnp.allclose(out, ref_matched, atol=1e-4, rtol=1e-4), (out, ref_matched)
    # Loose sanity check against the exact fp32 PyTorch-semantics reference
    # (bf16 weight storage introduces ~1e-4..1e-3 absolute error on bounded outputs).
    ref_f32 = _reference(x, w1, b1, w2, b2, bound)
    assert jnp.allclose(out, ref_f32, atol=5e-3, rtol=0.0), (out, ref_f32)

    print("KERNEL_OK")
</pallas_src>

<mosaic_0001>
module attributes {stable_mosaic.version = 11 : i64} {
  func.func @_n2t_kernel(%arg0: memref<1xf32, #tpu.memory_space<smem>>, %arg1: memref<2x1024xf32, #tpu.memory_space<vmem>>, %arg2: memref<1024x256xbf16, #tpu.memory_space<vmem>>, %arg3: memref<1x256xf32, #tpu.memory_space<vmem>>, %arg4: memref<256x8xf32, #tpu.memory_space<vmem>>, %arg5: memref<1x8xf32, #tpu.memory_space<vmem>>, %arg6: memref<2x8xf32, #tpu.memory_space<vmem>>) attributes {dimension_semantics = [], scalar_prefetch = 0 : i64, scratch_operands = 0 : i64, tpu.core_type = #tpu.core_type<tc>} {
    %c0 = arith.constant 0 : index
    %0 = memref.load %arg0[%c0] : memref<1xf32, #tpu.memory_space<smem>>
    %c0_0 = arith.constant 0 : index
    %c0_1 = arith.constant 0 : index
    %1 = vector.load %arg1[%c0_0, %c0_1] : memref<2x1024xf32, #tpu.memory_space<vmem>>, vector<2x1024xf32>
    %2 = arith.truncf %1 : vector<2x1024xf32> to vector<2x1024xbf16>
    %c0_2 = arith.constant 0 : index
    %c0_3 = arith.constant 0 : index
    %3 = vector.load %arg2[%c0_2, %c0_3] : memref<1024x256xbf16, #tpu.memory_space<vmem>>, vector<1024x256xbf16>
    %cst = arith.constant dense<0.000000e+00> : vector<2x256xf32>
    %4 = tpu.matmul %2, %3, %cst {dimension_numbers = #tpu.dot_dimension_numbers<[1], [0], [0], [1], [0, 0, 1, 1], [], []>} : vector<2x1024xbf16>, vector<1024x256xbf16>, vector<2x256xf32> -> vector<2x256xf32>
    %c0_4 = arith.constant 0 : index
    %c0_5 = arith.constant 0 : index
    %5 = vector.load %arg3[%c0_4, %c0_5] : memref<1x256xf32, #tpu.memory_space<vmem>>, vector<1x256xf32>
    %6 = vector.broadcast %5 : vector<1x256xf32> to vector<2x256xf32>
    %7 = arith.addf %4, %6 : vector<2x256xf32>
    %cst_6 = arith.constant 0.000000e+00 : f32
    %8 = vector.broadcast %cst_6 : f32 to vector<2x256xf32>
    %9 = arith.maximumf %7, %8 : vector<2x256xf32>
    %c0_7 = arith.constant 0 : index
    %c0_8 = arith.constant 0 : index
    %10 = vector.load %arg4[%c0_7, %c0_8] : memref<256x8xf32, #tpu.memory_space<vmem>>, vector<256x8xf32>
    %cst_9 = arith.constant dense<0.000000e+00> : vector<2x8xf32>
    %11 = tpu.matmul %9, %10, %cst_9 {dimension_numbers = #tpu.dot_dimension_numbers<[1], [0], [0], [1], [0, 0, 1, 1], [], []>} : vector<2x256xf32>, vector<256x8xf32>, vector<2x8xf32> -> vector<2x8xf32>
    %c0_10 = arith.constant 0 : index
    %c0_11 = arith.constant 0 : index
    %12 = vector.load %arg5[%c0_10, %c0_11] : memref<1x8xf32, #tpu.memory_space<vmem>>, vector<1x8xf32>
    %13 = vector.broadcast %12 : vector<1x8xf32> to vector<2x8xf32>
    %14 = arith.addf %11, %13 : vector<2x8xf32>
    %15 = math.tanh %14 : vector<2x8xf32>
    %16 = vector.broadcast %0 : f32 to vector<2x8xf32>
    %17 = arith.mulf %16, %15 : vector<2x8xf32>
    %c0_12 = arith.constant 0 : index
    %c0_13 = arith.constant 0 : index
    %18 = vector.load %arg6[%c0_12, %c0_13] : memref<2x8xf32, #tpu.memory_space<vmem>>, vector<2x8xf32>
    tpu.vector_store %arg6[%c0_12, %c0_13], %17 {strides = array<i32>} : memref<2x8xf32, #tpu.memory_space<vmem>>, vector<2x8xf32>,
    return
  }
}

</mosaic_0001>

<llo_original>
// kernel: n2t_forward.1
$region0: #{n2t_forward.1}
  #allocation0 [shape = 'u32[]', space=smem, size = 0x4, offset = 0x4, fixed_abs, tag = 'smem constant byte address 0x4 - core index']
  #allocation1 [shape = 'u32[144,128]{1,0:T(1,128)}', space=vmem, size = 0x12000, scoped, tag = 'internal scratch']
  #allocation2 [shape = 'f32[1]{0:T(128)S(6)}', space=smem, size = 0x200, scoped, tag = 'scoped memory for n2t_forward.1']
  %s0 = inlined_call_operand.<no memory space> [shape: f32[1], index: 0, kind: input, shape index: {}]
  %s1 = inlined_call_operand.vmem [shape: f32[2,1024], index: 1, kind: input, shape index: {}]
  %s2 = inlined_call_operand.hbm [shape: bf16[1024,256], index: 2, kind: input, shape index: {}]
  %s3 = inlined_call_operand.vmem [shape: f32[1,256], index: 3, kind: input, shape index: {}]
  %s4 = inlined_call_operand.vmem [shape: f32[256,8], index: 4, kind: input, shape index: {}]
  %s5 = inlined_call_operand.vmem [shape: f32[1,8], index: 5, kind: input, shape index: {}]
  %s6 = inlined_call_operand.hbm [shape: f32[2,8], index: 6, kind: output, shape index: {}]
  %s7 = sld [smem:[#allocation0]]
  $region38: #{n2t_forward.1} parent=0
    _
  %s9 = ssub.s32 1, %s7
  %s10 = scalar_select 0, %s9, %s7
  %11 = sst [smem:[#allocation2]] %s0
  $region1: #{n2t_forward.1} parent=0
    #allocation3 [shape = 'u8[524288]{0}', space=vmem, size = 0x80000, scoped, tag = 'input window, operand 2, single buffered']
    #allocation4 [shape = 's32[1]{0}', space=sflag, size = 0x4, scoped, tag = 'scoped memory for n2t_forward.1']
    #allocation5 [shape = 's32[1]{0}', space=sflag, size = 0x4, scoped, tag = 'scoped memory for n2t_forward.1']
    #allocation6 [shape = 'u8[1024]{0}', space=vmem, size = 0x400, scoped, tag = 'output window, operand 0, single buffered']
    %12 = vsyncpa [#allocation4], 0
    %13 = vsyncpa [#allocation5], 0
    // Predicated region
    $region2: #{n2t_forward.1} parent=1 // pred_check
      _
    $region3: #{n2t_forward.1} parent=1 // pred_check_branch
      %15 = sbr.rel (0) target = $region5
    $region4: #{n2t_forward.1} parent=1 // pred_region
      _
    $region5: #{n2t_forward.1} parent=1 // pred_fallthru
      _
    // Predicated region
    $region6: #{n2t_forward.1} parent=1 // pred_check
      _
    $region7: #{n2t_forward.1} parent=1 // pred_check_branch
      %17 = sbr.rel (0) target = $region9
    $region8: #{n2t_forward.1} parent=1 // pred_region
      _
    $region9: #{n2t_forward.1} parent=1 // pred_fallthru
      _
    // Predicated region
    $region10: #{n2t_forward.1} parent=1 // pred_check
      _
    $region11: #{n2t_forward.1} parent=1 // pred_check_branch
      %19 = sbr.rel (0) target = $region13
    $region12: #{n2t_forward.1} parent=1 // pred_region
      %s21 = ssub.s32 16384, 16384
      %22 = vsyncadd [#allocation4], %s21
      %s23 = sshll.u32 [#allocation3], 4
      %s24 = int_to_ptr.vmem [resolvable:$true] %s23
      %29 = dma.hbm_to_vmem [thread:$0]  %s2, 16384, %s24, [#allocation4], 128, 128, 8
    $region13: #{n2t_forward.1} parent=1 // pred_fallthru
      _
    // Predicated region
    $region14: #{n2t_forward.1} parent=1 // pred_check
      _
    $region15: #{n2t_forward.1} parent=1 // pred_check_branch
      %31 = sbr.rel (0) target = $region17
    $region16: #{n2t_forward.1} parent=1 // pred_region
      _
    $region17: #{n2t_forward.1} parent=1 // pred_fallthru
      _
    // Predicated region
    $region18: #{n2t_forward.1} parent=1 // pred_check
      _
    $region19: #{n2t_forward.1} parent=1 // pred_check_branch
      %33 = sbr.rel (0) target = $region21
    $region20: #{n2t_forward.1} parent=1 // pred_region
      _
    $region21: #{n2t_forward.1} parent=1 // pred_fallthru
      _
    // Predicated region
    $region22: #{n2t_forward.1} parent=1 // pred_check
      _
    $region23: #{n2t_forward.1} parent=1 // pred_check_branch
      %35 = sbr.rel (0) target = $region25
    $region24: #{n2t_forward.1} parent=1 // pred_region
      _
    $region25: #{n2t_forward.1} parent=1 // pred_fallthru
      _
    // Predicated region
    $region26: #{n2t_forward.1} parent=1 // pred_check
      _
    $region27: #{n2t_forward.1} parent=1 // pred_check_branch
      %37 = sbr.rel (0) target = $region29
    $region28: #{n2t_forward.1} parent=1 // pred_region
      %38 = dma.done [#allocation4], 16384
    $region29: #{n2t_forward.1} parent=1 // pred_fallthru
      _
    %s39 = sld [smem:[#allocation2]]
    %v40 = vld [vmem:[%s1] sm:$0xff]
    %v41 = vld [vmem:[%s1 + $0x8] sm:$0xff]
    %v44 = vcombine.high %v40, %v40
    %v46 = vunpack.c.l.s4 1983009808
    %v47 = vunpack.c.0.s8 %v46
    %v48 = vlaneseq
    %v49 = vshrl.u32 %v48, 7
    %v50 = vsub.s32 %v47, %v49
    %v51 = vrot.slane %v40, %v50
    %v53 = vunpack.c.l.s4 1983009808
    %v54 = vunpack.c.0.s8 %v53
    %v55 = vlaneseq
    %v56 = vshrl.u32 %v55, 7
    %v57 = vsub.s32 %v54, %v56
    %v58 = vrot.slane %v44, %v57
    %v59 = vcombine.high %v51, %v51
    %v60 = vcombine.high %v58, %v58
    %v61 = vcombine.high %v41, %v41
    %v63 = vunpack.c.l.s4 1983009808
    %v64 = vunpack.c.0.s8 %v63
    %v65 = vlaneseq
    %v66 = vshrl.u32 %v65, 7
    %v67 = vsub.s32 %v64, %v66
    %v68 = vrot.slane %v41, %v67
    %v70 = vunpack.c.l.s4 1983009808
    %v71 = vunpack.c.0.s8 %v70
    %v72 = vlaneseq
    %v73 = vshrl.u32 %v72, 7
    %v74 = vsub.s32 %v71, %v73
    %v75 = vrot.slane %v61, %v74
    %v76 = vcombine.high %v68, %v68
    %v77 = vcombine.high %v75, %v75
    %v86 = vpack.c.bf16 %v51, %v51
    %v87 = vpack.c.bf16 %v59, %v59
    %v88 = vpack.c.bf16 %v58, %v58
    %v89 = vpack.c.bf16 %v60, %v60
    %v90 = vpack.c.bf16 %v68, %v68
    %v91 = vpack.c.bf16 %v76, %v76
    %v92 = vpack.c.bf16 %v75, %v75
    %v93 = vpack.c.bf16 %v77, %v77
    %v94 = vld [vmem:[#allocation3] sm:$0xff]
    %v95 = vld [vmem:[#allocation3 + $0x8] sm:$0xff]
    %v96 = vld [vmem:[#allocation3 + $0x10] sm:$0xff]
    %v97 = vld [vmem:[#allocation3 + $0x18] sm:$0xff]
    %v98 = vld [vmem:[#allocation3 + $0x20] sm:$0xff]
    %v99 = vld [vmem:[#allocation3 + $0x28] sm:$0xff]
    %v100 = vld [vmem:[#allocation3 + $0x30] sm:$0xff]
    %v101 = vld [vmem:[#allocation3 + $0x38] sm:$0xff]
    %v102 = vld [vmem:[#allocation3 + $0x40] sm:$0xff]
    %v103 = vld [vmem:[#allocation3 + $0x48] sm:$0xff]
    %v104 = vld [vmem:[#allocation3 + $0x50] sm:$0xff]
    %v105 = vld [vmem:[#allocation3 + $0x58] sm:$0xff]
    %v106 = vld [vmem:[#allocation3 + $0x60] sm:$0xff]
    %v107 = vld [vmem:[#allocation3 + $0x68] sm:$0xff]
    %v108 = vld [vmem:[#allocation3 + $0x70] sm:$0xff]
    %v109 = vld [vmem:[#allocation3 + $0x78] sm:$0xff]
    %v110 = vld [vmem:[#allocation3 + $0x80] sm:$0xff]
    %v111 = vld [vmem:[#allocation3 + $0x88] sm:$0xff]
    %v112 = vld [vmem:[#allocation3 + $0x90] sm:$0xff]
    %v113 = vld [vmem:[#allocation3 + $0x98] sm:$0xff]
    %v114 = vld [vmem:[#allocation3 + $0xa0] sm:$0xff]
    %v115 = vld [vmem:[#allocation3 + $0xa8] sm:$0xff]
    %v116 = vld [vmem:[#allocation3 + $0xb0] sm:$0xff]
    %v117 = vld [vmem:[#allocation3 + $0xb8] sm:$0xff]
    %v118 = vld [vmem:[#allocation3 + $0xc0] sm:$0xff]
    %v119 = vld [vmem:[#allocation3 + $0xc8] sm:$0xff]
    %v120 = vld [vmem:[#allocation3 + $0xd0] sm:$0xff]
    %v121 = vld [vmem:[#allocation3 + $0xd8] sm:$0xff]
    %v122 = vld [vmem:[#allocation3 + $0xe0] sm:$0xff]
    %v123 = vld [vmem:[#allocation3 + $0xe8] sm:$0xff]
    %v124 = vld [vmem:[#allocation3 + $0xf0] sm:$0xff]
    %v125 = vld [vmem:[#allocation3 + $0xf8] sm:$0xff]
    %v126 = vld [vmem:[#allocation3 + $0x100] sm:$0xff]
    %v127 = vld [vmem:[#allocation3 + $0x108] sm:$0xff]
    %v128 = vld [vmem:[#allocation3 + $0x110] sm:$0xff]
    %v129 = vld [vmem:[#allocation3 + $0x118] sm:$0xff]
    %v130 = vld [vmem:[#allocation3 + $0x120] sm:$0xff]
    %v131 = vld [vmem:[#allocation3 + $0x128] sm:$0xff]
    %v132 = vld [vmem:[#allocation3 + $0x130] sm:$0xff]
    %v133 = vld [vmem:[#allocation3 + $0x138] sm:$0xff]
    %v134 = vld [vmem:[#allocation3 + $0x140] sm:$0xff]
    %v135 = vld [vmem:[#allocation3 + $0x148] sm:$0xff]
    %v136 = vld [vmem:[#allocation3 + $0x150] sm:$0xff]
    %v137 = vld [vmem:[#allocation3 + $0x158] sm:$0xff]
    %v138 = vld [vmem:[#allocation3 + $0x160] sm:$0xff]
    %v139 = vld [vmem:[#allocation3 + $0x168] sm:$0xff]
    %v140 = vld [vmem:[#allocation3 + $0x170] sm:$0xff]
    %v141 = vld [vmem:[#allocation3 + $0x178] sm:$0xff]
    %v142 = vld [vmem:[#allocation3 + $0x180] sm:$0xff]
    %v143 = vld [vmem:[#allocation3 + $0x188] sm:$0xff]
    %v144 = vld [vmem:[#allocation3 + $0x190] sm:$0xff]
    %v145 = vld [vmem:[#allocation3 + $0x198] sm:$0xff]
    %v146 = vld [vmem:[#allocation3 + $0x1a0] sm:$0xff]
    %v147 = vld [vmem:[#allocation3 + $0x1a8] sm:$0xff]
    %v148 = vld [vmem:[#allocation3 + $0x1b0] sm:$0xff]
    %v149 = vld [vmem:[#allocation3 + $0x1b8] sm:$0xff]
    %v150 = vld [vmem:[#allocation3 + $0x1c0] sm:$0xff]
    %v151 = vld [vmem:[#allocation3 + $0x1c8] sm:$0xff]
    %v152 = vld [vmem:[#allocation3 + $0x1d0] sm:$0xff]
    %v153 = vld [vmem:[#allocation3 + $0x1d8] sm:$0xff]
    %v154 = vld [vmem:[#allocation3 + $0x1e0] sm:$0xff]
    %v155 = vld [vmem:[#allocation3 + $0x1e8] sm:$0xff]
    %v156 = vld [vmem:[#allocation3 + $0x1f0] sm:$0xff]
    %v157 = vld [vmem:[#allocation3 + $0x1f8] sm:$0xff]
    %v158 = vld [vmem:[#allocation3 + $0x200] sm:$0xff]
    %v159 = vld [vmem:[#allocation3 + $0x208] sm:$0xff]
    %v160 = vld [vmem:[#allocation3 + $0x210] sm:$0xff]
    %v161 = vld [vmem:[#allocation3 + $0x218] sm:$0xff]
    %v162 = vld [vmem:[#allocation3 + $0x220] sm:$0xff]
    %v163 = vld [vmem:[#allocation3 + $0x228] sm:$0xff]
    %v164 = vld [vmem:[#allocation3 + $0x230] sm:$0xff]
    %v165 = vld [vmem:[#allocation3 + $0x238] sm:$0xff]
    %v166 = vld [vmem:[#allocation3 + $0x240] sm:$0xff]
    %v167 = vld [vmem:[#allocation3 + $0x248] sm:$0xff]
    %v168 = vld [vmem:[#allocation3 + $0x250] sm:$0xff]
    %v169 = vld [vmem:[#allocation3 + $0x258] sm:$0xff]
    %v170 = vld [vmem:[#allocation3 + $0x260] sm:$0xff]
    %v171 = vld [vmem:[#allocation3 + $0x268] sm:$0xff]
    %v172 = vld [vmem:[#allocation3 + $0x270] sm:$0xff]
    %v173 = vld [vmem:[#allocation3 + $0x278] sm:$0xff]
    %v174 = vld [vmem:[#allocation3 + $0x280] sm:$0xff]
    %v175 = vld [vmem:[#allocation3 + $0x288] sm:$0xff]
    %v176 = vld [vmem:[#allocation3 + $0x290] sm:$0xff]
    %v177 = vld [vmem:[#allocation3 + $0x298] sm:$0xff]
    %v178 = vld [vmem:[#allocation3 + $0x2a0] sm:$0xff]
    %v179 = vld [vmem:[#allocation3 + $0x2a8] sm:$0xff]
    %v180 = vld [vmem:[#allocation3 + $0x2b0] sm:$0xff]
    %v181 = vld [vmem:[#allocation3 + $0x2b8] sm:$0xff]
    %v182 = vld [vmem:[#allocation3 + $0x2c0] sm:$0xff]
    %v183 = vld [vmem:[#allocation3 + $0x2c8] sm:$0xff]
    %v184 = vld [vmem:[#allocation3 + $0x2d0] sm:$0xff]
    %v185 = vld [vmem:[#allocation3 + $0x2d8] sm:$0xff]
    %v186 = vld [vmem:[#allocation3 + $0x2e0] sm:$0xff]
    %v187 = vld [vmem:[#allocation3 + $0x2e8] sm:$0xff]
    %v188 = vld [vmem:[#allocation3 + $0x2f0] sm:$0xff]
    %v189 = vld [vmem:[#allocation3 + $0x2f8] sm:$0xff]
    %v190 = vld [vmem:[#allocation3 + $0x300] sm:$0xff]
    %v191 = vld [vmem:[#allocation3 + $0x308] sm:$0xff]
    %v192 = vld [vmem:[#allocation3 + $0x310] sm:$0xff]
    %v193 = vld [vmem:[#allocation3 + $0x318] sm:$0xff]
    %v194 = vld [vmem:[#allocation3 + $0x320] sm:$0xff]
    %v195 = vld [vmem:[#allocation3 + $0x328] sm:$0xff]
    %v196 = vld [vmem:[#allocation3 + $0x330] sm:$0xff]
    %v197 = vld [vmem:[#allocation3 + $0x338] sm:$0xff]
    %v198 = vld [vmem:[#allocation3 + $0x340] sm:$0xff]
    %v199 = vld [vmem:[#allocation3 + $0x348] sm:$0xff]
    %v200 = vld [vmem:[#allocation3 + $0x350] sm:$0xff]
    %v201 = vld [vmem:[#allocation3 + $0x358] sm:$0xff]
    %v202 = vld [vmem:[#allocation3 + $0x360] sm:$0xff]
    %v203 = vld [vmem:[#allocation3 + $0x368] sm:$0xff]
    %v204 = vld [vmem:[#allocation3 + $0x370] sm:$0xff]
    %v205 = vld [vmem:[#allocation3 + $0x378] sm:$0xff]
    %v206 = vld [vmem:[#allocation3 + $0x380] sm:$0xff]
    %v207 = vld [vmem:[#allocation3 + $0x388] sm:$0xff]
    %v208 = vld [vmem:[#allocation3 + $0x390] sm:$0xff]
    %v209 = vld [vmem:[#allocation3 + $0x398] sm:$0xff]
    %v210 = vld [vmem:[#allocation3 + $0x3a0] sm:$0xff]
    %v211 = vld [vmem:[#allocation3 + $0x3a8] sm:$0xff]
    %v212 = vld [vmem:[#allocation3 + $0x3b0] sm:$0xff]
    %v213 = vld [vmem:[#allocation3 + $0x3b8] sm:$0xff]
    %v214 = vld [vmem:[#allocation3 + $0x3c0] sm:$0xff]
    %v215 = vld [vmem:[#allocation3 + $0x3c8] sm:$0xff]
    %v216 = vld [vmem:[#allocation3 + $0x3d0] sm:$0xff]
    %v217 = vld [vmem:[#allocation3 + $0x3d8] sm:$0xff]
    %v218 = vld [vmem:[#allocation3 + $0x3e0] sm:$0xff]
    %v219 = vld [vmem:[#allocation3 + $0x3e8] sm:$0xff]
    %v220 = vld [vmem:[#allocation3 + $0x3f0] sm:$0xff]
    %v221 = vld [vmem:[#allocation3 + $0x3f8] sm:$0xff]
    %v222 = vld [vmem:[%s3] sm:$0x3]
    %v224 = vlaneseq
    %v225 = vshrl.u32 %v224, 7
    %v226 = vsub.s32 0, %v225
    %v227 = vrot.slane %v222, %v226
    %v228 = vlaneseq
    %v229 = vshrl.u32 %v228, 7
    %v230 = vsub.s32 1, %v229
    %v231 = vrot.slane %v222, %v230
    %v362 = vunpack.c.l.b16 %v94
    %v363 = vunpack.c.h.b16 %v94
    %v364 = vunpack.c.l.b16 %v95
    %v365 = vunpack.c.h.b16 %v95
    %v366 = vunpack.c.l.b16 %v96
    %v367 = vunpack.c.h.b16 %v96
    %v368 = vunpack.c.l.b16 %v97
    %v369 = vunpack.c.h.b16 %v97
    %v370 = vunpack.c.l.b16 %v98
    %v371 = vunpack.c.h.b16 %v98
    %v372 = vunpack.c.l.b16 %v99
    %v373 = vunpack.c.h.b16 %v99
    %v374 = vunpack.c.l.b16 %v100
    %v375 = vunpack.c.h.b16 %v100
    %v376 = vunpack.c.l.b16 %v101
    %v377 = vunpack.c.h.b16 %v101
    %v378 = vunpack.c.l.b16 %v102
    %v379 = vunpack.c.h.b16 %v102
    %v380 = vunpack.c.l.b16 %v103
    %v381 = vunpack.c.h.b16 %v103
    %v382 = vunpack.c.l.b16 %v104
    %v383 = vunpack.c.h.b16 %v104
    %v384 = vunpack.c.l.b16 %v105
    %v385 = vunpack.c.h.b16 %v105
    %v386 = vunpack.c.l.b16 %v106
    %v387 = vunpack.c.h.b16 %v106
    %v388 = vunpack.c.l.b16 %v107
    %v389 = vunpack.c.h.b16 %v107
    %v390 = vunpack.c.l.b16 %v108
    %v391 = vunpack.c.h.b16 %v108
    %v392 = vunpack.c.l.b16 %v109
    %v393 = vunpack.c.h.b16 %v109
    %v394 = vunpack.c.l.b16 %v110
    %v395 = vunpack.c.h.b16 %v110
    %v396 = vunpack.c.l.b16 %v111
    %v397 = vunpack.c.h.b16 %v111
    %v398 = vunpack.c.l.b16 %v112
    %v399 = vunpack.c.h.b16 %v112
    %v400 = vunpack.c.l.b16 %v113
    %v401 = vunpack.c.h.b16 %v113
    %v402 = vunpack.c.l.b16 %v114
    %v403 = vunpack.c.h.b16 %v114
    %v404 = vunpack.c.l.b16 %v115
    %v405 = vunpack.c.h.b16 %v115
    %v406 = vunpack.c.l.b16 %v116
    %v407 = vunpack.c.h.b16 %v116
    %v408 = vunpack.c.l.b16 %v117
    %v409 = vunpack.c.h.b16 %v117
    %v410 = vunpack.c.l.b16 %v118
    %v411 = vunpack.c.h.b16 %v118
    %v412 = vunpack.c.l.b16 %v119
    %v413 = vunpack.c.h.b16 %v119
    %v414 = vunpack.c.l.b16 %v120
    %v415 = vunpack.c.h.b16 %v120
    %v416 = vunpack.c.l.b16 %v121
    %v417 = vunpack.c.h.b16 %v121
    %v418 = vunpack.c.l.b16 %v122
    %v419 = vunpack.c.h.b16 %v122
    %v420 = vunpack.c.l.b16 %v123
    %v421 = vunpack.c.h.b16 %v123
    %v422 = vunpack.c.l.b16 %v124
    %v423 = vunpack.c.h.b16 %v124
    %v424 = vunpack.c.l.b16 %v125
    %v425 = vunpack.c.h.b16 %v125
    %v426 = vunpack.c.l.b16 %v126
    %v427 = vunpack.c.h.b16 %v126
    %v428 = vunpack.c.l.b16 %v127
    %v429 = vunpack.c.h.b16 %v127
    %v430 = vunpack.c.l.b16 %v128
    %v431 = vunpack.c.h.b16 %v128
    %v432 = vunpack.c.l.b16 %v129
    %v433 = vunpack.c.h.b16 %v129
    %v434 = vunpack.c.l.b16 %v130
    %v435 = vunpack.c.h.b16 %v130
    %v436 = vunpack.c.l.b16 %v131
    %v437 = vunpack.c.h.b16 %v131
    %v438 = vunpack.c.l.b16 %v132
    %v439 = vunpack.c.h.b16 %v132
    %v440 = vunpack.c.l.b16 %v133
    %v441 = vunpack.c.h.b16 %v133
    %v442 = vunpack.c.l.b16 %v134
    %v443 = vunpack.c.h.b16 %v134
    %v444 = vunpack.c.l.b16 %v135
    %v445 = vunpack.c.h.b16 %v135
    %v446 = vunpack.c.l.b16 %v136
    %v447 = vunpack.c.h.b16 %v136
    %v448 = vunpack.c.l.b16 %v137
    %v449 = vunpack.c.h.b16 %v137
    %v450 = vunpack.c.l.b16 %v138
    %v451 = vunpack.c.h.b16 %v138
    %v452 = vunpack.c.l.b16 %v139
    %v453 = vunpack.c.h.b16 %v139
    %v454 = vunpack.c.l.b16 %v140
    %v455 = vunpack.c.h.b16 %v140
    %v456 = vunpack.c.l.b16 %v141
    %v457 = vunpack.c.h.b16 %v141
    %v458 = vunpack.c.l.b16 %v142
    %v459 = vunpack.c.h.b16 %v142
    %v460 = vunpack.c.l.b16 %v143
    %v461 = vunpack.c.h.b16 %v143
    %v462 = vunpack.c.l.b16 %v144
    %v463 = vunpack.c.h.b16 %v144
    %v464 = vunpack.c.l.b16 %v145
    %v465 = vunpack.c.h.b16 %v145
    %v466 = vunpack.c.l.b16 %v146
    %v467 = vunpack.c.h.b16 %v146
    %v468 = vunpack.c.l.b16 %v147
    %v469 = vunpack.c.h.b16 %v147
    %v470 = vunpack.c.l.b16 %v148
    %v471 = vunpack.c.h.b16 %v148
    %v472 = vunpack.c.l.b16 %v149
    %v473 = vunpack.c.h.b16 %v149
    %v474 = vunpack.c.l.b16 %v150
    %v475 = vunpack.c.h.b16 %v150
    %v476 = vunpack.c.l.b16 %v151
    %v477 = vunpack.c.h.b16 %v151
    %v478 = vunpack.c.l.b16 %v152
    %v479 = vunpack.c.h.b16 %v152
    %v480 = vunpack.c.l.b16 %v153
    %v481 = vunpack.c.h.b16 %v153
    %v482 = vunpack.c.l.b16 %v154
    %v483 = vunpack.c.h.b16 %v154
    %v484 = vunpack.c.l.b16 %v155
    %v485 = vunpack.c.h.b16 %v155
    %v486 = vunpack.c.l.b16 %v156
    %v487 = vunpack.c.h.b16 %v156
    %v488 = vunpack.c.l.b16 %v157
    %v489 = vunpack.c.h.b16 %v157
    %v490 = vunpack.c.l.b16 %v158
    %v491 = vunpack.c.h.b16 %v158
    %v492 = vunpack.c.l.b16 %v159
    %v493 = vunpack.c.h.b16 %v159
    %v494 = vunpack.c.l.b16 %v160
    %v495 = vunpack.c.h.b16 %v160
    %v496 = vunpack.c.l.b16 %v161
    %v497 = vunpack.c.h.b16 %v161
    %v498 = vunpack.c.l.b16 %v162
    %v499 = vunpack.c.h.b16 %v162
    %v500 = vunpack.c.l.b16 %v163
    %v501 = vunpack.c.h.b16 %v163
    %v502 = vunpack.c.l.b16 %v164
    %v503 = vunpack.c.h.b16 %v164
    %v504 = vunpack.c.l.b16 %v165
    %v505 = vunpack.c.h.b16 %v165
    %v506 = vunpack.c.l.b16 %v166
    %v507 = vunpack.c.h.b16 %v166
    %v508 = vunpack.c.l.b16 %v167
    %v509 = vunpack.c.h.b16 %v167
    %v510 = vunpack.c.l.b16 %v168
    %v511 = vunpack.c.h.b16 %v168
    %v512 = vunpack.c.l.b16 %v169
    %v513 = vunpack.c.h.b16 %v169
    %v514 = vunpack.c.l.b16 %v170
    %v515 = vunpack.c.h.b16 %v170
    %v516 = vunpack.c.l.b16 %v171
    %v517 = vunpack.c.h.b16 %v171
    %v518 = vunpack.c.l.b16 %v172
    %v519 = vunpack.c.h.b16 %v172
    %v520 = vunpack.c.l.b16 %v173
    %v521 = vunpack.c.h.b16 %v173
    %v522 = vunpack.c.l.b16 %v174
    %v523 = vunpack.c.h.b16 %v174
    %v524 = vunpack.c.l.b16 %v175
    %v525 = vunpack.c.h.b16 %v175
    %v526 = vunpack.c.l.b16 %v176
    %v527 = vunpack.c.h.b16 %v176
    %v528 = vunpack.c.l.b16 %v177
    %v529 = vunpack.c.h.b16 %v177
    %v530 = vunpack.c.l.b16 %v178
    %v531 = vunpack.c.h.b16 %v178
    %v532 = vunpack.c.l.b16 %v179
    %v533 = vunpack.c.h.b16 %v179
    %v534 = vunpack.c.l.b16 %v180
    %v535 = vunpack.c.h.b16 %v180
    %v536 = vunpack.c.l.b16 %v181
    %v537 = vunpack.c.h.b16 %v181
    %v538 = vunpack.c.l.b16 %v182
    %v539 = vunpack.c.h.b16 %v182
    %v540 = vunpack.c.l.b16 %v183
    %v541 = vunpack.c.h.b16 %v183
    %v542 = vunpack.c.l.b16 %v184
    %v543 = vunpack.c.h.b16 %v184
    %v544 = vunpack.c.l.b16 %v185
    %v545 = vunpack.c.h.b16 %v185
    %v546 = vunpack.c.l.b16 %v186
    %v547 = vunpack.c.h.b16 %v186
    %v548 = vunpack.c.l.b16 %v187
    %v549 = vunpack.c.h.b16 %v187
    %v550 = vunpack.c.l.b16 %v188
    %v551 = vunpack.c.h.b16 %v188
    %v552 = vunpack.c.l.b16 %v189
    %v553 = vunpack.c.h.b16 %v189
    %v554 = vunpack.c.l.b16 %v190
    %v555 = vunpack.c.h.b16 %v190
    %v556 = vunpack.c.l.b16 %v191
    %v557 = vunpack.c.h.b16 %v191
    %v558 = vunpack.c.l.b16 %v192
    %v559 = vunpack.c.h.b16 %v192
    %v560 = vunpack.c.l.b16 %v193
    %v561 = vunpack.c.h.b16 %v193
    %v562 = vunpack.c.l.b16 %v194
    %v563 = vunpack.c.h.b16 %v194
    %v564 = vunpack.c.l.b16 %v195
    %v565 = vunpack.c.h.b16 %v195
    %v566 = vunpack.c.l.b16 %v196
    %v567 = vunpack.c.h.b16 %v196
    %v568 = vunpack.c.l.b16 %v197
    %v569 = vunpack.c.h.b16 %v197
    %v570 = vunpack.c.l.b16 %v198
    %v571 = vunpack.c.h.b16 %v198
    %v572 = vunpack.c.l.b16 %v199
    %v573 = vunpack.c.h.b16 %v199
    %v574 = vunpack.c.l.b16 %v200
    %v575 = vunpack.c.h.b16 %v200
    %v576 = vunpack.c.l.b16 %v201
    %v577 = vunpack.c.h.b16 %v201
    %v578 = vunpack.c.l.b16 %v202
    %v579 = vunpack.c.h.b16 %v202
    %v580 = vunpack.c.l.b16 %v203
    %v581 = vunpack.c.h.b16 %v203
    %v582 = vunpack.c.l.b16 %v204
    %v583 = vunpack.c.h.b16 %v204
    %v584 = vunpack.c.l.b16 %v205
    %v585 = vunpack.c.h.b16 %v205
    %v586 = vunpack.c.l.b16 %v206
    %v587 = vunpack.c.h.b16 %v206
    %v588 = vunpack.c.l.b16 %v207
    %v589 = vunpack.c.h.b16 %v207
    %v590 = vunpack.c.l.b16 %v208
    %v591 = vunpack.c.h.b16 %v208
    %v592 = vunpack.c.l.b16 %v209
    %v593 = vunpack.c.h.b16 %v209
    %v594 = vunpack.c.l.b16 %v210
    %v595 = vunpack.c.h.b16 %v210
    %v596 = vunpack.c.l.b16 %v211
    %v597 = vunpack.c.h.b16 %v211
    %v598 = vunpack.c.l.b16 %v212
    %v599 = vunpack.c.h.b16 %v212
    %v600 = vunpack.c.l.b16 %v213
    %v601 = vunpack.c.h.b16 %v213
    %v602 = vunpack.c.l.b16 %v214
    %v603 = vunpack.c.h.b16 %v214
    %v604 = vunpack.c.l.b16 %v215
    %v605 = vunpack.c.h.b16 %v215
    %v606 = vunpack.c.l.b16 %v216
    %v607 = vunpack.c.h.b16 %v216
    %v608 = vunpack.c.l.b16 %v217
    %v609 = vunpack.c.h.b16 %v217
    %v610 = vunpack.c.l.b16 %v218
    %v611 = vunpack.c.h.b16 %v218
    %v612 = vunpack.c.l.b16 %v219
    %v613 = vunpack.c.h.b16 %v219
    %v614 = vunpack.c.l.b16 %v220
    %v615 = vunpack.c.h.b16 %v220
    %v616 = vunpack.c.l.b16 %v221
    %v617 = vunpack.c.h.b16 %v221
    %v618 = vpack.c.b16 %v364, %v362
    %v619 = vpack.c.b16 %v365, %v363
    %v620 = vpack.c.b16 %v368, %v366
    %v621 = vpack.c.b16 %v369, %v367
    %v622 = vpack.c.b16 %v372, %v370
    %v623 = vpack.c.b16 %v373, %v371
    %v624 = vpack.c.b16 %v376, %v374
    %v625 = vpack.c.b16 %v377, %v375
    %v626 = vpack.c.b16 %v380, %v378
    %v627 = vpack.c.b16 %v381, %v379
    %v628 = vpack.c.b16 %v384, %v382
    %v629 = vpack.c.b16 %v385, %v383
    %v630 = vpack.c.b16 %v388, %v386
    %v631 = vpack.c.b16 %v389, %v387
    %v632 = vpack.c.b16 %v392, %v390
    %v633 = vpack.c.b16 %v393, %v391
    %v634 = vpack.c.b16 %v396, %v394
    %v635 = vpack.c.b16 %v397, %v395
    %v636 = vpack.c.b16 %v400, %v398
    %v637 = vpack.c.b16 %v401, %v399
    %v638 = vpack.c.b16 %v404, %v402
    %v639 = vpack.c.b16 %v405, %v403
    %v640 = vpack.c.b16 %v408, %v406
    %v641 = vpack.c.b16 %v409, %v407
    %v642 = vpack.c.b16 %v412, %v410
    %v643 = vpack.c.b16 %v413, %v411
    %v644 = vpack.c.b16 %v416, %v414
    %v645 = vpack.c.b16 %v417, %v415
    %v646 = vpack.c.b16 %v420, %v418
    %v647 = vpack.c.b16 %v421, %v419
    %v648 = vpack.c.b16 %v424, %v422
    %v649 = vpack.c.b16 %v425, %v423
    %v650 = vpack.c.b16 %v428, %v426
    %v651 = vpack.c.b16 %v429, %v427
    %v652 = vpack.c.b16 %v432, %v430
    %v653 = vpack.c.b16 %v433, %v431
    %v654 = vpack.c.b16 %v436, %v434
    %v655 = vpack.c.b16 %v437, %v435
    %v656 = vpack.c.b16 %v440, %v438
    %v657 = vpack.c.b16 %v441, %v439
    %v658 = vpack.c.b16 %v444, %v442
    %v659 = vpack.c.b16 %v445, %v443
    %v660 = vpack.c.b16 %v448, %v446
    %v661 = vpack.c.b16 %v449, %v447
    %v662 = vpack.c.b16 %v452, %v450
    %v663 = vpack.c.b16 %v453, %v451
    %v664 = vpack.c.b16 %v456, %v454
    %v665 = vpack.c.b16 %v457, %v455
    %v666 = vpack.c.b16 %v460, %v458
    %v667 = vpack.c.b16 %v461, %v459
    %v668 = vpack.c.b16 %v464, %v462
    %v669 = vpack.c.b16 %v465, %v463
    %v670 = vpack.c.b16 %v468, %v466
    %v671 = vpack.c.b16 %v469, %v467
    %v672 = vpack.c.b16 %v472, %v470
    %v673 = vpack.c.b16 %v473, %v471
    %v674 = vpack.c.b16 %v476, %v474
    %v675 = vpack.c.b16 %v477, %v475
    %v676 = vpack.c.b16 %v480, %v478
    %v677 = vpack.c.b16 %v481, %v479
    %v678 = vpack.c.b16 %v484, %v482
    %v679 = vpack.c.b16 %v485, %v483
    %v680 = vpack.c.b16 %v488, %v486
    %v681 = vpack.c.b16 %v489, %v487
    %v682 = vpack.c.b16 %v492, %v490
    %v683 = vpack.c.b16 %v493, %v491
    %v684 = vpack.c.b16 %v496, %v494
    %v685 = vpack.c.b16 %v497, %v495
    %v686 = vpack.c.b16 %v500, %v498
    %v687 = vpack.c.b16 %v501, %v499
    %v688 = vpack.c.b16 %v504, %v502
    %v689 = vpack.c.b16 %v505, %v503
    %v690 = vpack.c.b16 %v508, %v506
    %v691 = vpack.c.b16 %v509, %v507
    %v692 = vpack.c.b16 %v512, %v510
    %v693 = vpack.c.b16 %v513, %v511
    %v694 = vpack.c.b16 %v516, %v514
    %v695 = vpack.c.b16 %v517, %v515
    %v696 = vpack.c.b16 %v520, %v518
    %v697 = vpack.c.b16 %v521, %v519
    %v698 = vpack.c.b16 %v524, %v522
    %v699 = vpack.c.b16 %v525, %v523
    %v700 = vpack.c.b16 %v528, %v526
    %v701 = vpack.c.b16 %v529, %v527
    %v702 = vpack.c.b16 %v532, %v530
    %v703 = vpack.c.b16 %v533, %v531
    %v704 = vpack.c.b16 %v536, %v534
    %v705 = vpack.c.b16 %v537, %v535
    %v706 = vpack.c.b16 %v540, %v538
    %v707 = vpack.c.b16 %v541, %v539
    %v708 = vpack.c.b16 %v544, %v542
    %v709 = vpack.c.b16 %v545, %v543
    %v710 = vpack.c.b16 %v548, %v546
    %v711 = vpack.c.b16 %v549, %v547
    %v712 = vpack.c.b16 %v552, %v550
    %v713 = vpack.c.b16 %v553, %v551
    %v714 = vpack.c.b16 %v556, %v554
    %v715 = vpack.c.b16 %v557, %v555
    %v716 = vpack.c.b16 %v560, %v558
    %v717 = vpack.c.b16 %v561, %v559
    %v718 = vpack.c.b16 %v564, %v562
    %v719 = vpack.c.b16 %v565, %v563
    %v720 = vpack.c.b16 %v568, %v566
    %v721 = vpack.c.b16 %v569, %v567
    %v722 = vpack.c.b16 %v572, %v570
    %v723 = vpack.c.b16 %v573, %v571
    %v724 = vpack.c.b16 %v576, %v574
    %v725 = vpack.c.b16 %v577, %v575
    %v726 = vpack.c.b16 %v580, %v578
    %v727 = vpack.c.b16 %v581, %v579
    %v728 = vpack.c.b16 %v584, %v582
    %v729 = vpack.c.b16 %v585, %v583
    %v730 = vpack.c.b16 %v588, %v586
    %v731 = vpack.c.b16 %v589, %v587
    %v732 = vpack.c.b16 %v592, %v590
    %v733 = vpack.c.b16 %v593, %v591
    %v734 = vpack.c.b16 %v596, %v594
    %v735 = vpack.c.b16 %v597, %v595
    %v736 = vpack.c.b16 %v600, %v598
    %v737 = vpack.c.b16 %v601, %v599
    %v738 = vpack.c.b16 %v604, %v602
    %v739 = vpack.c.b16 %v605, %v603
    %v740 = vpack.c.b16 %v608, %v606
    %v741 = vpack.c.b16 %v609, %v607
    %v742 = vpack.c.b16 %v612, %v610
    %v743 = vpack.c.b16 %v613, %v611
    %v744 = vpack.c.b16 %v616, %v614
    %v745 = vpack.c.b16 %v617, %v615
    %874 = vmatprep.subr.bf16.mxu0 %v633
    %875 = vmatpush1.bf16.msra.mxu0 %v632
    %876 = vmatprep.subr.bf16.mxu0 %v631
    %877 = vmatpush1.bf16.msra.mxu0 %v630
    %878 = vmatprep.subr.bf16.mxu0 %v629
    %879 = vmatpush1.bf16.msra.mxu0 %v628
    %880 = vmatprep.subr.bf16.mxu0 %v627
    %881 = vmatpush1.bf16.msra.mxu0 %v626
    %882 = vmatprep.subr.bf16.mxu0 %v625
    %883 = vmatpush1.bf16.msra.mxu0 %v624
    %884 = vmatprep.subr.bf16.mxu0 %v623
    %885 = vmatpush1.bf16.msra.mxu0 %v622
    %886 = vmatprep.subr.bf16.mxu0 %v621
    %887 = vmatpush1.bf16.msra.mxu0 %v620
    %888 = vmatprep.subr.bf16.mxu0 %v619
    %889 = vmatpush1.bf16.msra.mxu0 %v618
    %890 = vmatprep.subr.bf16.mxu0 %v649
    %891 = vmatpush2.bf16.msra.mxu0 %v648
    %892 = vmatprep.subr.bf16.mxu0 %v647
    %893 = vmatpush2.bf16.msra.mxu0 %v646
    %894 = vmatprep.subr.bf16.mxu0 %v645
    %895 = vmatpush2.bf16.msra.mxu0 %v644
    %896 = vmatprep.subr.bf16.mxu0 %v643
    %897 = vmatpush2.bf16.msra.mxu0 %v642
    %898 = vmatprep.subr.bf16.mxu0 %v641
    %899 = vmatpush2.bf16.msra.mxu0 %v640
    %900 = vmatprep.subr.bf16.mxu0 %v639
    %901 = vmatpush2.bf16.msra.mxu0 %v638
    %902 = vmatprep.subr.bf16.mxu0 %v637
    %903 = vmatpush2.bf16.msra.mxu0 %v636
    %904 = vmatprep.subr.bf16.mxu0 %v635
    %905 = vmatpush2.bf16.msra.mxu0 %v634
    %906 = vmatprep.mubr.bf16.mxu0 %v87
    %907 = vmatmul.mubr.bf16.gmra.mxu0 %v86
    %v908 = vpop.f32.mrf.mxu0
    %v909 = vadd.f32 %v227, %v908
    %v910 = vpop.f32.mrf.mxu0
    %v911 = vadd.f32 %v231, %v910
    %v912 = vpop.f32.mrf.mxu0
    %v913 = vpop.f32.mrf.mxu0
    %914 = vdwg.mxu0
    %915 = vmatprep.subr.bf16.mxu0 %v665
    %916 = vmatpush1.bf16.msra.mxu0 %v664
    %917 = vmatprep.subr.bf16.mxu0 %v663
    %918 = vmatpush1.bf16.msra.mxu0 %v662
    %919 = vmatprep.subr.bf16.mxu0 %v661
    %920 = vmatpush1.bf16.msra.mxu0 %v660
    %921 = vmatprep.subr.bf16.mxu0 %v659
    %922 = vmatpush1.bf16.msra.mxu0 %v658
    %923 = vmatprep.subr.bf16.mxu0 %v657
    %924 = vmatpush1.bf16.msra.mxu0 %v656
    %925 = vmatprep.subr.bf16.mxu0 %v655
    %926 = vmatpush1.bf16.msra.mxu0 %v654
    %927 = vmatprep.subr.bf16.mxu0 %v653
    %928 = vmatpush1.bf16.msra.mxu0 %v652
    %929 = vmatprep.subr.bf16.mxu0 %v651
    %930 = vmatpush1.bf16.msra.mxu0 %v650
    %931 = vmatprep.subr.bf16.mxu0 %v681
    %932 = vmatpush2.bf16.msra.mxu0 %v680
    %933 = vmatprep.subr.bf16.mxu0 %v679
    %934 = vmatpush2.bf16.msra.mxu0 %v678
    %935 = vmatprep.subr.bf16.mxu0 %v677
    %936 = vmatpush2.bf16.msra.mxu0 %v676
    %937 = vmatprep.subr.bf16.mxu0 %v675
    %938 = vmatpush2.bf16.msra.mxu0 %v674
    %939 = vmatprep.subr.bf16.mxu0 %v673
    %940 = vmatpush2.bf16.msra.mxu0 %v672
    %941 = vmatprep.subr.bf16.mxu0 %v671
    %942 = vmatpush2.bf16.msra.mxu0 %v670
    %943 = vmatprep.subr.bf16.mxu0 %v669
    %944 = vmatpush2.bf16.msra.mxu0 %v668
    %945 = vmatprep.subr.bf16.mxu0 %v667
    %946 = vmatpush2.bf16.msra.mxu0 %v666
    %947 = vmatprep.mubr.bf16.mxu0 %v89
    %948 = vmatmul.mubr.bf16.gmra.mxu0 %v88
    %v949 = vpop.f32.mrf.mxu0
    %v950 = vadd.f32 %v909, %v949
    %v951 = vpop.f32.mrf.mxu0
    %v952 = vadd.f32 %v911, %v951
    %v953 = vpop.f32.mrf.mxu0
    %v954 = vpop.f32.mrf.mxu0
    %955 = vdwg.mxu0
    %956 = vmatprep.subr.bf16.mxu0 %v697
    %957 = vmatpush1.bf16.msra.mxu0 %v696
    %958 = vmatprep.subr.bf16.mxu0 %v695
    %959 = vmatpush1.bf16.msra.mxu0 %v694
    %960 = vmatprep.subr.bf16.mxu0 %v693
    %961 = vmatpush1.bf16.msra.mxu0 %v692
    %962 = vmatprep.subr.bf16.mxu0 %v691
    %963 = vmatpush1.bf16.msra.mxu0 %v690
    %964 = vmatprep.subr.bf16.mxu0 %v689
    %965 = vmatpush1.bf16.msra.mxu0 %v688
    %966 = vmatprep.subr.bf16.mxu0 %v687
    %967 = vmatpush1.bf16.msra.mxu0 %v686
    %968 = vmatprep.subr.bf16.mxu0 %v685
    %969 = vmatpush1.bf16.msra.mxu0 %v684
    %970 = vmatprep.subr.bf16.mxu0 %v683
    %971 = vmatpush1.bf16.msra.mxu0 %v682
    %972 = vmatprep.subr.bf16.mxu0 %v713
    %973 = vmatpush2.bf16.msra.mxu0 %v712
    %974 = vmatprep.subr.bf16.mxu0 %v711
    %975 = vmatpush2.bf16.msra.mxu0 %v710
    %976 = vmatprep.subr.bf16.mxu0 %v709
    %977 = vmatpush2.bf16.msra.mxu0 %v708
    %978 = vmatprep.subr.bf16.mxu0 %v707
    %979 = vmatpush2.bf16.msra.mxu0 %v706
    %980 = vmatprep.subr.bf16.mxu0 %v705
    %981 = vmatpush2.bf16.msra.mxu0 %v704
    %982 = vmatprep.subr.bf16.mxu0 %v703
    %983 = vmatpush2.bf16.msra.mxu0 %v702
    %984 = vmatprep.subr.bf16.mxu0 %v701
    %985 = vmatpush2.bf16.msra.mxu0 %v700
    %986 = vmatprep.subr.bf16.mxu0 %v699
    %987 = vmatpush2.bf16.msra.mxu0 %v698
    %988 = vmatprep.mubr.bf16.mxu0 %v91
    %989 = vmatmul.mubr.bf16.gmra.mxu0 %v90
    %v990 = vpop.f32.mrf.mxu0
    %v991 = vadd.f32 %v950, %v990
    %v992 = vpop.f32.mrf.mxu0
    %v993 = vadd.f32 %v952, %v992
    %v994 = vpop.f32.mrf.mxu0
    %v995 = vpop.f32.mrf.mxu0
    %996 = vdwg.mxu0
    %997 = vmatprep.subr.bf16.mxu0 %v729
    %998 = vmatpush1.bf16.msra.mxu0 %v728
    %999 = vmatprep.subr.bf16.mxu0 %v727
    %1000 = vmatpush1.bf16.msra.mxu0 %v726
    %1001 = vmatprep.subr.bf16.mxu0 %v725
    %1002 = vmatpush1.bf16.msra.mxu0 %v724
    %1003 = vmatprep.subr.bf16.mxu0 %v723
    %1004 = vmatpush1.bf16.msra.mxu0 %v722
    %1005 = vmatprep.subr.bf16.mxu0 %v721
    %1006 = vmatpush1.bf16.msra.mxu0 %v720
    %1007 = vmatprep.subr.bf16.mxu0 %v719
    %1008 = vmatpush1.bf16.msra.mxu0 %v718
    %1009 = vmatprep.subr.bf16.mxu0 %v717
    %1010 = vmatpush1.bf16.msra.mxu0 %v716
    %1011 = vmatprep.subr.bf16.mxu0 %v715
    %1012 = vmatpush1.bf16.msra.mxu0 %v714
    %1013 = vmatprep.subr.bf16.mxu0 %v745
    %1014 = vmatpush2.bf16.msra.mxu0 %v744
    %1015 = vmatprep.subr.bf16.mxu0 %v743
    %1016 = vmatpush2.bf16.msra.mxu0 %v742
    %1017 = vmatprep.subr.bf16.mxu0 %v741
    %1018 = vmatpush2.bf16.msra.mxu0 %v740
    %1019 = vmatprep.subr.bf16.mxu0 %v739
    %1020 = vmatpush2.bf16.msra.mxu0 %v738
    %1021 = vmatprep.subr.bf16.mxu0 %v737
    %1022 = vmatpush2.bf16.msra.mxu0 %v736
    %1023 = vmatprep.subr.bf16.mxu0 %v735
    %1024 = vmatpush2.bf16.msra.mxu0 %v734
    %1025 = vmatprep.subr.bf16.mxu0 %v733
    %1026 = vmatpush2.bf16.msra.mxu0 %v732
    %1027 = vmatprep.subr.bf16.mxu0 %v731
    %1028 = vmatpush2.bf16.msra.mxu0 %v730
    %1029 = vmatprep.mubr.bf16.mxu0 %v93
    %1030 = vmatmul.mubr.bf16.gmra.mxu0 %v92
    %v1031 = vpop.f32.mrf.mxu0
    %v1032 = vadd.f32 %v991, %v1031
    %v1033 = vpop.f32.mrf.mxu0
    %v1034 = vadd.f32 %v993, %v1033
    %v1035 = vpop.f32.mrf.mxu0
    %v1036 = vpop.f32.mrf.mxu0
    %1037 = vdwg.mxu0
    %v1038 = vmax.f32 %v1032, 0.0
    %v1039 = vmax.f32 %v1034, 0.0
    %v1040 = vld [vmem:[%s4] sm:$0xff]
    %v1041 = vld [vmem:[%s4 + $0x8] sm:$0xff]
    %v1042 = vld [vmem:[%s4 + $0x10] sm:$0xff]
    %v1043 = vld [vmem:[%s4 + $0x18] sm:$0xff]
    %v1044 = vld [vmem:[%s4 + $0x20] sm:$0xff]
    %v1045 = vld [vmem:[%s4 + $0x28] sm:$0xff]
    %v1046 = vld [vmem:[%s4 + $0x30] sm:$0xff]
    %v1047 = vld [vmem:[%s4 + $0x38] sm:$0xff]
    %v1048 = vld [vmem:[%s4 + $0x40] sm:$0xff]
    %v1049 = vld [vmem:[%s4 + $0x48] sm:$0xff]
    %v1050 = vld [vmem:[%s4 + $0x50] sm:$0xff]
    %v1051 = vld [vmem:[%s4 + $0x58] sm:$0xff]
    %v1052 = vld [vmem:[%s4 + $0x60] sm:$0xff]
    %v1053 = vld [vmem:[%s4 + $0x68] sm:$0xff]
    %v1054 = vld [vmem:[%s4 + $0x70] sm:$0xff]
    %v1055 = vld [vmem:[%s4 + $0x78] sm:$0xff]
    %v1056 = vld [vmem:[%s4 + $0x80] sm:$0xff]
    %v1057 = vld [vmem:[%s4 + $0x88] sm:$0xff]
    %v1058 = vld [vmem:[%s4 + $0x90] sm:$0xff]
    %v1059 = vld [vmem:[%s4 + $0x98] sm:$0xff]
    %v1060 = vld [vmem:[%s4 + $0xa0] sm:$0xff]
    %v1061 = vld [vmem:[%s4 + $0xa8] sm:$0xff]
    %v1062 = vld [vmem:[%s4 + $0xb0] sm:$0xff]
    %v1063 = vld [vmem:[%s4 + $0xb8] sm:$0xff]
    %v1064 = vld [vmem:[%s4 + $0xc0] sm:$0xff]
    %v1065 = vld [vmem:[%s4 + $0xc8] sm:$0xff]
    %v1066 = vld [vmem:[%s4 + $0xd0] sm:$0xff]
    %v1067 = vld [vmem:[%s4 + $0xd8] sm:$0xff]
    %v1068 = vld [vmem:[%s4 + $0xe0] sm:$0xff]
    %v1069 = vld [vmem:[%s4 + $0xe8] sm:$0xff]
    %v1070 = vld [vmem:[%s4 + $0xf0] sm:$0xff]
    %v1071 = vld [vmem:[%s4 + $0xf8] sm:$0xff]
    %v1072 = vld [vmem:[%s5] sm:$0x1]
    %v1074 = vlaneseq
    %v1075 = vshrl.u32 %v1074, 7
    %v1076 = vsub.s32 0, %v1075
    %v1077 = vrot.slane %v1072, %v1076
    %1079 = vmatprep.subr.mxu0 0.0
    %1080 = vmatpush1.msra.mxu0 %v1055
    %1081 = vmatprep.subr.mxu0 0.0
    %1082 = vmatpush1.msra.mxu0 %v1054
    %1083 = vmatprep.subr.mxu0 0.0
    %1084 = vmatpush1.msra.mxu0 %v1053
    %1085 = vmatprep.subr.mxu0 0.0
    %1086 = vmatpush1.msra.mxu0 %v1052
    %1087 = vmatprep.subr.mxu0 0.0
    %1088 = vmatpush1.msra.mxu0 %v1051
    %1089 = vmatprep.subr.mxu0 0.0
    %1090 = vmatpush1.msra.mxu0 %v1050
    %1091 = vmatprep.subr.mxu0 0.0
    %1092 = vmatpush1.msra.mxu0 %v1049
    %1093 = vmatprep.subr.mxu0 0.0
    %1094 = vmatpush1.msra.mxu0 %v1048
    %1095 = vmatprep.subr.mxu0 0.0
    %1096 = vmatpush1.msra.mxu0 %v1047
    %1097 = vmatprep.subr.mxu0 0.0
    %1098 = vmatpush1.msra.mxu0 %v1046
    %1099 = vmatprep.subr.mxu0 0.0
    %1100 = vmatpush1.msra.mxu0 %v1045
    %1101 = vmatprep.subr.mxu0 0.0
    %1102 = vmatpush1.msra.mxu0 %v1044
    %1103 = vmatprep.subr.mxu0 0.0
    %1104 = vmatpush1.msra.mxu0 %v1043
    %1105 = vmatprep.subr.mxu0 0.0
    %1106 = vmatpush1.msra.mxu0 %v1042
    %1107 = vmatprep.subr.mxu0 0.0
    %1108 = vmatpush1.msra.mxu0 %v1041
    %1109 = vmatprep.subr.mxu0 0.0
    %1110 = vmatpush1.msra.mxu0 %v1040
    %1111 = vmatprep.subr.mxu0 0.0
    %1112 = vmatpush2.msra.mxu0 %v1071
    %1113 = vmatprep.subr.mxu0 0.0
    %1114 = vmatpush2.msra.mxu0 %v1070
    %1115 = vmatprep.subr.mxu0 0.0
    %1116 = vmatpush2.msra.mxu0 %v1069
    %1117 = vmatprep.subr.mxu0 0.0
    %1118 = vmatpush2.msra.mxu0 %v1068
    %1119 = vmatprep.subr.mxu0 0.0
    %1120 = vmatpush2.msra.mxu0 %v1067
    %1121 = vmatprep.subr.mxu0 0.0
    %1122 = vmatpush2.msra.mxu0 %v1066
    %1123 = vmatprep.subr.mxu0 0.0
    %1124 = vmatpush2.msra.mxu0 %v1065
    %1125 = vmatprep.subr.mxu0 0.0
    %1126 = vmatpush2.msra.mxu0 %v1064
    %1127 = vmatprep.subr.mxu0 0.0
    %1128 = vmatpush2.msra.mxu0 %v1063
    %1129 = vmatprep.subr.mxu0 0.0
    %1130 = vmatpush2.msra.mxu0 %v1062
    %1131 = vmatprep.subr.mxu0 0.0
    %1132 = vmatpush2.msra.mxu0 %v1061
    %1133 = vmatprep.subr.mxu0 0.0
    %1134 = vmatpush2.msra.mxu0 %v1060
    %1135 = vmatprep.subr.mxu0 0.0
    %1136 = vmatpush2.msra.mxu0 %v1059
    %1137 = vmatprep.subr.mxu0 0.0
    %1138 = vmatpush2.msra.mxu0 %v1058
    %1139 = vmatprep.subr.mxu0 0.0
    %1140 = vmatpush2.msra.mxu0 %v1057
    %1141 = vmatprep.subr.mxu0 0.0
    %1142 = vmatpush2.msra.mxu0 %v1056
    %1143 = vmatprep.mubr.f32.mxu0 %v1039
    %1144 = vmatmul.mubr.f32.gmra.mxu0 %v1038
    %v1145 = vpop.f32.mrf.mxu0
    %v1146 = vadd.f32 %v1077, %v1145
    %v1147 = vpop.f32.mrf.mxu0
    %1148 = vdwg.mxu0
    %v1149 = vtanh.pop %v1146
    %v1150 = vstv %s39
    %v1151 = vmul.f32 %v1150, %v1149
    %vm1152 = vcmask 58368
    %1153 = vst.msk [vmem:[#allocation6] sm:$0x3] %vm1152, %v1151
    // Predicated region
    $region30: #{n2t_forward.1} parent=1 // pred_check
      _
    $region31: #{n2t_forward.1} parent=1 // pred_check_branch
      %1155 = sbr.rel (0) target = $region33
    $region32: #{n2t_forward.1} parent=1 // pred_region
      %s1157 = ssub.s32 32, 32
      %1158 = vsyncadd [#allocation5], %s1157
      %s1160 = sshll.u32 [#allocation6], 4
      %s1161 = int_to_ptr.vmem [resolvable:$true] %s1160
      %1163 = dma.vmem_to_hbm [thread:$0]  %s1161, 32, %s6, [#allocation5]
    $region33: #{n2t_forward.1} parent=1 // pred_fallthru
      _
    // Predicated region
    $region34: #{n2t_forward.1} parent=1 // pred_check
      _
    $region35: #{n2t_forward.1} parent=1 // pred_check_branch
      %1165 = sbr.rel (0) target = $region37
    $region36: #{n2t_forward.1} parent=1 // pred_region
      %1166 = dma.done [#allocation5], 32
    $region37: #{n2t_forward.1} parent=1 // pred_fallthru
      _
    %1167 = vsyncpa [#allocation4], 1
    %1168 = vsyncpa [#allocation5], 1

</llo_original>
